<compile_context>
chip_gen: v7x
topology: tpu7x:2x2x1
jax: 0.10.0
libtpu: 0.0.40
codegen_flags: <defaults>
</compile_context>

<pallas_src>
import jax
import jax.numpy as jnp
import numpy as np
from jax.experimental import pallas as pl
from jax.experimental.pallas import tpu as pltpu


def _attention_pool_kernel(w_ref, q_ref, kv_ref, o_ref):
    # w_ref : SMEM (1, 1)   bandwidth parameter
    # q_ref : VMEM (1, DP)  queries along lanes (zero-padded past D)
    # kv_ref: VMEM (D, 2)   column 0 = keys, column 1 = values (sublane-major)
    # o_ref : VMEM (1, DP)  pooled output along lanes
    w = w_ref[0, 0]
    c2 = w * 0.7071067811865476                # w / sqrt(2), scalar slots: free

    q_s = q_ref[...] * c2                      # (1, DP) tiny mul
    k_s = kv_ref[:, 0:1] * c2                  # (D, 1)  tiny mul
    v_col = kv_ref[:, 1:2]                     # (D, 1)

    diff = q_s - k_s                           # (D, DP) broadcasted subtract
    d2 = diff * diff                           # (D, DP); scores_T = -d2

    # Softmax over the key axis (axis 0). Shift by the max score == -min(d2):
    #   exp(scores - max) = exp(d2_min - d2)   (one sub, no extra negate/mul).
    d2_min = jnp.min(d2, axis=0, keepdims=True)        # (1, DP) sublane reduce
    e = jnp.exp(d2_min - d2)                           # (D, DP) EUP
    s = jnp.sum(e, axis=0, keepdims=True)              # (1, DP) denominator
    num = jnp.sum(e * v_col, axis=0, keepdims=True)    # (1, DP) weighted sum

    o_ref[...] = (num * pl.reciprocal(s, approx=True)).astype(o_ref.dtype)


def attention_pool_with_parameter(q, k, v, w):
    """q, k, v: (1, D) float32; w: (1,) float32. Returns (1, D) float32."""
    d = q.shape[1]
    dp = ((d + 127) // 128) * 128              # lane-pad queries/output to 128x

    q32 = q.astype(jnp.float32)
    q_pad = jnp.zeros((1, dp), jnp.float32).at[:, :d].set(q32)
    kv = jnp.stack(
        [k[0].astype(jnp.float32), v[0].astype(jnp.float32)], axis=-1
    )                                          # (D, 2), keys/values on sublanes
    w_smem = w.reshape(1, 1).astype(jnp.float32)

    out_pad = pl.pallas_call(
        _attention_pool_kernel,
        out_shape=jax.ShapeDtypeStruct((1, dp), jnp.float32),
        in_specs=[
            pl.BlockSpec(memory_space=pltpu.MemorySpace.SMEM),  # w (1, 1)
            pl.BlockSpec((1, dp), lambda: (0, 0)),              # q (lane row)
            pl.BlockSpec((d, 2), lambda: (0, 0)),               # kv (sublane cols)
        ],
        out_specs=pl.BlockSpec((1, dp), lambda: (0, 0)),
    )(w_smem, q_pad, kv)

    return out_pad[:, :d]                      # drop padded query columns


def _reference(q, k, v, w):
    # Pure-JAX reference mirroring the PyTorch forward exactly.
    d = k.shape[1]
    q_mat = jnp.repeat(q.reshape(-1), d).reshape(-1, d)   # (D, D)
    scores = -((q_mat - k) * w[0]) ** 2 / 2.0
    attn = jax.nn.softmax(scores, axis=1)
    return (attn @ v.reshape(d, 1)).reshape(1, d)


if __name__ == "__main__":
    dim = 50  # matches the module docstring: q, k, v are (1, 50)

    key = jax.random.PRNGKey(0)
    kq, kk, kv_, kw = jax.random.split(key, 4)
    q = jax.random.normal(kq, (1, dim), dtype=jnp.float32)
    k = jax.random.normal(kk, (1, dim), dtype=jnp.float32)
    v = jax.random.normal(kv_, (1, dim), dtype=jnp.float32)
    # torch.rand((1,)) -> uniform [0, 1), initialized deterministically here.
    w = jax.random.uniform(kw, (1,), dtype=jnp.float32)

    out = attention_pool_with_parameter(q, k, v, w)
    out = jax.block_until_ready(out)

    ref = _reference(q, k, v, w)
    # Tolerance loosened slightly: the kernel uses the EUP approximate
    # reciprocal (pl.reciprocal(..., approx=True)) for the softmax denominator.
    np.testing.assert_allclose(np.asarray(out), np.asarray(ref),
                               rtol=1e-3, atol=1e-3)
    print("KERNEL_OK")
</pallas_src>

<mosaic_0001>
module attributes {stable_mosaic.version = 11 : i64} {
  func.func @_attention_pool_kernel(%arg0: memref<1x1xf32, #tpu.memory_space<smem>>, %arg1: memref<1x128xf32, #tpu.memory_space<vmem>>, %arg2: memref<50x2xf32, #tpu.memory_space<vmem>>, %arg3: memref<1x128xf32, #tpu.memory_space<vmem>>) attributes {dimension_semantics = [], scalar_prefetch = 0 : i64, scratch_operands = 0 : i64, tpu.core_type = #tpu.core_type<tc>} {
    %c0 = arith.constant 0 : index
    %c0_0 = arith.constant 0 : index
    %0 = memref.load %arg0[%c0, %c0_0] : memref<1x1xf32, #tpu.memory_space<smem>>
    %cst = arith.constant 0.707106769 : f32
    %1 = arith.mulf %0, %cst : f32
    %c0_1 = arith.constant 0 : index
    %c0_2 = arith.constant 0 : index
    %2 = vector.load %arg1[%c0_1, %c0_2] : memref<1x128xf32, #tpu.memory_space<vmem>>, vector<1x128xf32>
    %3 = vector.broadcast %1 : f32 to vector<1x128xf32>
    %4 = arith.mulf %2, %3 : vector<1x128xf32>
    %c0_3 = arith.constant 0 : index
    %c0_4 = arith.constant 0 : index
    %5 = vector.load %arg2[%c0_3, %c0_4] : memref<50x2xf32, #tpu.memory_space<vmem>>, vector<50x1xf32>
    %6 = vector.broadcast %1 : f32 to vector<50x1xf32>
    %7 = arith.mulf %5, %6 : vector<50x1xf32>
    %c0_5 = arith.constant 0 : index
    %c1 = arith.constant 1 : index
    %8 = vector.load %arg2[%c0_5, %c1] : memref<50x2xf32, #tpu.memory_space<vmem>>, vector<50x1xf32>
    %9 = vector.broadcast %4 : vector<1x128xf32> to vector<50x128xf32>
    %10 = vector.broadcast %7 : vector<50x1xf32> to vector<50x128xf32>
    %11 = arith.subf %9, %10 : vector<50x128xf32>
    %12 = arith.mulf %11, %11 : vector<50x128xf32>
    %cst_6 = arith.constant dense<0x7F800000> : vector<128xf32>
    %13 = vector.multi_reduction <minimumf>, %12, %cst_6 [0] : vector<50x128xf32> to vector<128xf32>
    %14 = vector.shape_cast %13 : vector<128xf32> to vector<1x128xf32>
    %15 = vector.broadcast %14 : vector<1x128xf32> to vector<50x128xf32>
    %16 = arith.subf %15, %12 : vector<50x128xf32>
    %17 = math.exp %16 : vector<50x128xf32>
    %cst_7 = arith.constant dense<0.000000e+00> : vector<128xf32>
    %18 = vector.multi_reduction <add>, %17, %cst_7 [0] : vector<50x128xf32> to vector<128xf32>
    %19 = vector.shape_cast %18 : vector<128xf32> to vector<1x128xf32>
    %20 = vector.broadcast %8 : vector<50x1xf32> to vector<50x128xf32>
    %21 = arith.mulf %17, %20 : vector<50x128xf32>
    %cst_8 = arith.constant dense<0.000000e+00> : vector<128xf32>
    %22 = vector.multi_reduction <add>, %21, %cst_8 [0] : vector<50x128xf32> to vector<128xf32>
    %23 = vector.shape_cast %22 : vector<128xf32> to vector<1x128xf32>
    %24 = tpu.reciprocal %19 {approx = true} : vector<1x128xf32> -> vector<1x128xf32>
    %25 = arith.mulf %23, %24 : vector<1x128xf32>
    %c0_9 = arith.constant 0 : index
    %c0_10 = arith.constant 0 : index
    %26 = vector.load %arg3[%c0_9, %c0_10] : memref<1x128xf32, #tpu.memory_space<vmem>>, vector<1x128xf32>
    tpu.vector_store %arg3[%c0_9, %c0_10], %25 {strides = array<i32>} : memref<1x128xf32, #tpu.memory_space<vmem>>, vector<1x128xf32>,
    return
  }
}

</mosaic_0001>

<llo_original>
// kernel: tpu_custom_call.1
$region0: #{tpu_custom_call.1}
  #allocation0 [shape = 'u32[]', space=smem, size = 0x4, offset = 0x4, fixed_abs, tag = 'smem constant byte address 0x4 - core index']
  #allocation1 [shape = 'u32[144,128]{1,0:T(1,128)}', space=vmem, size = 0x12000, scoped, tag = 'internal scratch']
  #allocation2 [shape = 'f32[1,1]{1,0:T(1,128)S(6)}', space=smem, size = 0x200, scoped, tag = 'scoped memory for tpu_custom_call.1']
  %s0 = inlined_call_operand.<no memory space> [shape: f32[1,1], index: 0, kind: input, shape index: {}]
  %s1 = inlined_call_operand.vmem [shape: f32[1,128], index: 1, kind: input, shape index: {}]
  %s2 = inlined_call_operand.vmem [shape: f32[50,2], index: 2, kind: input, shape index: {}]
  %s3 = inlined_call_operand.hbm [shape: f32[1,128], index: 3, kind: output, shape index: {}]
  %s4 = sld [smem:[#allocation0]]
  $region22: #{tpu_custom_call.1} parent=0
    _
  %s6 = ssub.s32 1, %s4
  %s7 = scalar_select 0, %s6, %s4
  %8 = sst [smem:[#allocation2]] %s0
  $region1: #{tpu_custom_call.1} parent=0
    #allocation3 [shape = 'u8[512]{0}', space=vmem, size = 0x400, scoped, tag = 'output window, operand 0, single buffered']
    #allocation4 [shape = 's32[1]{0}', space=sflag, size = 0x4, scoped, tag = 'scoped memory for tpu_custom_call.1']
    %9 = vsyncpa [#allocation4], 0
    // Predicated region
    $region2: #{tpu_custom_call.1} parent=1 // pred_check
      _
    $region3: #{tpu_custom_call.1} parent=1 // pred_check_branch
      %11 = sbr.rel (0) target = $region5
    $region4: #{tpu_custom_call.1} parent=1 // pred_region
      _
    $region5: #{tpu_custom_call.1} parent=1 // pred_fallthru
      _
    // Predicated region
    $region6: #{tpu_custom_call.1} parent=1 // pred_check
      _
    $region7: #{tpu_custom_call.1} parent=1 // pred_check_branch
      %13 = sbr.rel (0) target = $region9
    $region8: #{tpu_custom_call.1} parent=1 // pred_region
      _
    $region9: #{tpu_custom_call.1} parent=1 // pred_fallthru
      _
    // Predicated region
    $region10: #{tpu_custom_call.1} parent=1 // pred_check
      _
    $region11: #{tpu_custom_call.1} parent=1 // pred_check_branch
      %15 = sbr.rel (0) target = $region13
    $region12: #{tpu_custom_call.1} parent=1 // pred_region
      _
    $region13: #{tpu_custom_call.1} parent=1 // pred_fallthru
      _
    %s16 = sld [smem:[#allocation2]]
    %s17 = smul.f32 %s16, 0.70710677
    %v18 = vld [vmem:[%s1] sm:$0x1]
    %v19 = vstv %s17
    %v20 = vmul.f32 %v18, %v19
    %v21 = vld [vmem:[%s2] sm:$0xff]
    %v22 = vld [vmem:[%s2 + $0x8] sm:$0xff]
    %v23 = vld [vmem:[%s2 + $0x10] sm:$0xff]
    %v24 = vld [vmem:[%s2 + $0x18] sm:$0xff]
    %v25 = vld [vmem:[%s2 + $0x20] sm:$0xff]
    %v26 = vld [vmem:[%s2 + $0x28] sm:$0xff]
    %v27 = vld [vmem:[%s2 + $0x30] sm:$0x3]
    %v28 = vmul.f32 %v21, %v19
    %v29 = vmul.f32 %v22, %v19
    %v30 = vmul.f32 %v23, %v19
    %v31 = vmul.f32 %v24, %v19
    %v32 = vmul.f32 %v25, %v19
    %v33 = vmul.f32 %v26, %v19
    %v34 = vmul.f32 %v27, %v19
    %v36 = vlaneseq
    %v37 = vshrl.u32 %v36, 7
    %v38 = vsub.s32 0, %v37
    %v39 = vrot.slane %v20, %v38
    %42 = vset.pattern.permute.xlu0 0
    %43 = vperm.xlu0 %42, %v28
    %v44 = vpop.permute.xlu0 %43
    %47 = vset.pattern.permute.xlu0 0
    %48 = vperm.xlu0 %47, %v29
    %v49 = vpop.permute.xlu0 %48
    %52 = vset.pattern.permute.xlu0 0
    %53 = vperm.xlu0 %52, %v30
    %v54 = vpop.permute.xlu0 %53
    %57 = vset.pattern.permute.xlu0 0
    %58 = vperm.xlu0 %57, %v31
    %v59 = vpop.permute.xlu0 %58
    %62 = vset.pattern.permute.xlu0 0
    %63 = vperm.xlu0 %62, %v32
    %v64 = vpop.permute.xlu0 %63
    %67 = vset.pattern.permute.xlu0 0
    %68 = vperm.xlu0 %67, %v33
    %v69 = vpop.permute.xlu0 %68
    %72 = vset.pattern.permute.xlu0 0
    %73 = vperm.xlu0 %72, %v34
    %v74 = vpop.permute.xlu0 %73
    %v76 = vsub.f32 %v39, %v44
    %v77 = vsub.f32 %v39, %v49
    %v78 = vsub.f32 %v39, %v54
    %v79 = vsub.f32 %v39, %v59
    %v80 = vsub.f32 %v39, %v64
    %v81 = vsub.f32 %v39, %v69
    %v82 = vsub.f32 %v39, %v74
    %v83 = vmul.f32 %v76, %v76
    %v84 = vmul.f32 %v77, %v77
    %v85 = vmul.f32 %v78, %v78
    %v86 = vmul.f32 %v79, %v79
    %v87 = vmul.f32 %v80, %v80
    %v88 = vmul.f32 %v81, %v81
    %v89 = vmul.f32 %v82, %v82
    %v90 = vmin.f32 %v83, %v87
    %v91 = vmin.f32 %v84, %v88
    %vm92 = vcmask 1041408
    %v93 = vsel %vm92, %v89, inf
    %v94 = vmin.f32 %v85, %v93
    %v95 = vmin.f32 %v90, %v91
    %v96 = vmin.f32 %v94, %v86
    %v97 = vmin.f32 %v95, %v96
    %v98 = vrot.slane %v97, 4
    %v99 = vmin.f32 %v97, %v98
    %v100 = vrot.slane %v99, 2
    %v101 = vmin.f32 %v99, %v100
    %v102 = vrot.slane %v101, 1
    %v103 = vmin.f32 %v101, %v102
    %v104 = vsub.f32 %v103, %v83
    %v105 = vsub.f32 %v103, %v84
    %v106 = vsub.f32 %v103, %v85
    %v107 = vsub.f32 %v103, %v86
    %v108 = vsub.f32 %v103, %v87
    %v109 = vsub.f32 %v103, %v88
    %v110 = vsub.f32 %v103, %v89
    %v111 = vmul.f32 %v104, 1.442695
    %v112 = vpow.pop %v111
    %v113 = vmul.f32 %v105, 1.442695
    %v114 = vpow.pop %v113
    %v115 = vmul.f32 %v106, 1.442695
    %v116 = vpow.pop %v115
    %v117 = vmul.f32 %v107, 1.442695
    %v118 = vpow.pop %v117
    %v119 = vmul.f32 %v108, 1.442695
    %v120 = vpow.pop %v119
    %v121 = vmul.f32 %v109, 1.442695
    %v122 = vpow.pop %v121
    %v123 = vmul.f32 %v110, 1.442695
    %v124 = vpow.pop %v123
    %v125 = vadd.f32 %v112, %v114
    %v126 = vadd.f32 %v125, %v116
    %v127 = vadd.f32 %v126, %v118
    %v128 = vadd.f32 %v127, %v120
    %v129 = vadd.f32 %v128, %v122
    %v130 = vsel %vm92, %v124, 0.0
    %v131 = vadd.f32 %v129, %v130
    %v132 = vrot.slane %v131, 4
    %v133 = vadd.f32 %v131, %v132
    %v134 = vrot.slane %v133, 2
    %v135 = vadd.f32 %v133, %v134
    %v136 = vrot.slane %v135, 1
    %v137 = vadd.f32 %v135, %v136
    %139 = vset.pattern.permute.xlu0 1
    %140 = vperm.xlu0 %139, %v21
    %v141 = vpop.permute.xlu0 %140
    %144 = vset.pattern.permute.xlu0 1
    %145 = vperm.xlu0 %144, %v22
    %v146 = vpop.permute.xlu0 %145
    %149 = vset.pattern.permute.xlu0 1
    %150 = vperm.xlu0 %149, %v23
    %v151 = vpop.permute.xlu0 %150
    %154 = vset.pattern.permute.xlu0 1
    %155 = vperm.xlu0 %154, %v24
    %v156 = vpop.permute.xlu0 %155
    %159 = vset.pattern.permute.xlu0 1
    %160 = vperm.xlu0 %159, %v25
    %v161 = vpop.permute.xlu0 %160
    %164 = vset.pattern.permute.xlu0 1
    %165 = vperm.xlu0 %164, %v26
    %v166 = vpop.permute.xlu0 %165
    %169 = vset.pattern.permute.xlu0 1
    %170 = vperm.xlu0 %169, %v27
    %v171 = vpop.permute.xlu0 %170
    %v173 = vmul.f32 %v112, %v141
    %v174 = vmul.f32 %v114, %v146
    %v175 = vmul.f32 %v116, %v151
    %v176 = vmul.f32 %v118, %v156
    %v177 = vmul.f32 %v120, %v161
    %v178 = vmul.f32 %v122, %v166
    %v179 = vmul.f32 %v124, %v171
    %v180 = vadd.f32 %v173, %v174
    %v181 = vadd.f32 %v180, %v175
    %v182 = vadd.f32 %v181, %v176
    %v183 = vadd.f32 %v182, %v177
    %v184 = vadd.f32 %v183, %v178
    %v185 = vsel %vm92, %v179, 0.0
    %v186 = vadd.f32 %v184, %v185
    %v187 = vrot.slane %v186, 4
    %v188 = vadd.f32 %v186, %v187
    %v189 = vrot.slane %v188, 2
    %v190 = vadd.f32 %v188, %v189
    %v191 = vrot.slane %v190, 1
    %v192 = vadd.f32 %v190, %v191
    %v193 = vrcp.pop %v137
    %v194 = vmul.f32 %v192, %v193
    %195 = vst [vmem:[#allocation3] sm:$0x1] %v194
    // Predicated region
    $region14: #{tpu_custom_call.1} parent=1 // pred_check
      _
    $region15: #{tpu_custom_call.1} parent=1 // pred_check_branch
      %197 = sbr.rel (0) target = $region17
    $region16: #{tpu_custom_call.1} parent=1 // pred_region
      %s199 = ssub.s32 16, 16
      %200 = vsyncadd [#allocation4], %s199
      %s202 = sshll.u32 [#allocation3], 4
      %s203 = int_to_ptr.vmem [resolvable:$true] %s202
      %205 = dma.vmem_to_hbm [thread:$0]  %s203, 16, %s3, [#allocation4]
    $region17: #{tpu_custom_call.1} parent=1 // pred_fallthru
      _
    // Predicated region
    $region18: #{tpu_custom_call.1} parent=1 // pred_check
      _
    $region19: #{tpu_custom_call.1} parent=1 // pred_check_branch
      %207 = sbr.rel (0) target = $region21
    $region20: #{tpu_custom_call.1} parent=1 // pred_region
      %208 = dma.done [#allocation4], 16
    $region21: #{tpu_custom_call.1} parent=1 // pred_fallthru
      _
    %209 = vsyncpa [#allocation4], 1

</llo_original>
